<compile_context>
chip_gen: v7x
topology: tpu7x:2x2x1
jax: 0.10.0
libtpu: 0.0.40
codegen_flags: <defaults>
</compile_context>

<pallas_src>
import jax
import jax.numpy as jnp
from jax.experimental import pallas as pl
from jax.experimental.pallas import tpu as pltpu


def _linear_kernel(x_ref, wt_ref, b_ref, o_ref):
    # x_ref : [TN, F]   one batch tile, native row-major layout (VMEM)
    # wt_ref: [F, OUT]  weight (OUT = 1), same block every grid step (VMEM, resident)
    # b_ref : [OUT]     bias scalar (SMEM)
    # o_ref : [TN, OUT] output tile (VMEM)
    y = jnp.dot(x_ref[...], wt_ref[...], preferred_element_type=jnp.float32)
    o_ref[...] = (y + b_ref[0]).astype(o_ref.dtype)


def _vmem_budgets():
    """Per-generation budgets: (double-buffered x-tile budget, vmem_limit_bytes)."""
    try:
        phys = int(pltpu.get_tpu_info().vmem_capacity_bytes)
    except Exception:
        phys = 64 << 20  # conservative fallback (v7x per-TC physical VMEM)
    # v5e/v6e (128 MiB): 40 MiB x budget, 64 MiB scoped limit.
    # v7x (64 MiB per TC): ~21 MiB x budget, 40 MiB scoped limit (headroom for
    # output buffers + Mosaic internal scratch).
    x_budget = min(phys // 3, 40 << 20)
    vmem_limit = min(max(32 << 20, phys - (24 << 20)), 64 << 20)
    return x_budget, vmem_limit


def _pick_batch_tile(n_pad, f, out_features, itemsize, x_budget_bytes):
    """Batch-tile size: multiple of 128, bounded by the double-buffer VMEM budget,
    and capped to leave >= 2 grid steps (v7x megacore) when the batch is large."""
    bytes_per_row = 2 * (f * itemsize + out_features * 4)  # x + out, double-buffered
    max_tn = (x_budget_bytes // max(bytes_per_row, 1)) // 128 * 128
    max_tn = max(max_tn, 128)
    tn = min(n_pad, max_tn)
    if n_pad > 256:
        # Guarantee >= 2 grid steps so both v7x TensorCores get work.
        half = max(((n_pad // 2) // 128) * 128, 128)
        tn = min(tn, half)
    return max((tn // 128) * 128, 128)


def linear_forward(x, w, b):
    """x: [N, F], w: [OUT, F] (torch layout), b: [OUT] -> [N, OUT] (matches nn.Linear)."""
    n, f = x.shape
    out_features = w.shape[0]
    assert w.shape == (out_features, f)
    assert out_features == 1, "module spec fixes output_size = 1"

    acc_dtype = jnp.float32
    # torch layout [OUT, F]; for OUT == 1 the transpose is a free reshape (no copy).
    wt = w.reshape(f, out_features)
    b_smem = b.reshape(out_features).astype(acc_dtype)

    # Pad the batch to a lane multiple only when ragged so every grid step runs the
    # full-burst DMA / unmasked-store path. (No-op when N is already 128-aligned.)
    n_pad = ((n + 127) // 128) * 128
    x_p = x if n_pad == n else jnp.pad(x, ((0, n_pad - n), (0, 0)))

    itemsize = x.dtype.itemsize
    x_budget, vmem_limit = _vmem_budgets()
    tn = _pick_batch_tile(n_pad, f, out_features, itemsize, x_budget)
    grid = (pl.cdiv(n_pad, tn),)

    cost = pl.CostEstimate(
        flops=2 * n_pad * f * out_features,
        transcendentals=0,
        bytes_accessed=(n_pad * f * itemsize            # x read
                        + f * out_features * itemsize   # W read
                        + out_features * 4              # bias read
                        + n_pad * out_features * 4),    # y write
    )

    # TODO(synk): feed bf16 x / W (f32 accumulation is already forced in the kernel)
    # when precision allows — this op is HBM-bandwidth-bound, so it is ~2x at large N.
    y = pl.pallas_call(
        _linear_kernel,
        out_shape=jax.ShapeDtypeStruct((n_pad, out_features), acc_dtype),
        grid=grid,
        in_specs=[
            pl.BlockSpec((tn, f), lambda i: (i, 0)),               # x batch tile (native)
            pl.BlockSpec((f, out_features), lambda i: (0, 0)),     # W^T (tiny, resident)
            pl.BlockSpec(memory_space=pltpu.MemorySpace.SMEM),     # bias scalar
        ],
        out_specs=pl.BlockSpec((tn, out_features), lambda i: (i, 0)),
        compiler_params=pltpu.CompilerParams(
            dimension_semantics=("parallel",),
            vmem_limit_bytes=vmem_limit,
        ),
        cost_estimate=cost,
    )(x_p, wt, b_smem)

    return y[:n]                                         # drop batch padding, [N, OUT]


if __name__ == "__main__":
    # Small shapes consistent with the module: batch=8 samples, n_features=4, output_size=1.
    N, F, OUT = 8, 4, 1

    key = jax.random.PRNGKey(0)
    kx, kw, kb = jax.random.split(key, 3)

    # Deterministic nn.Linear-style init: U(-1/sqrt(F), 1/sqrt(F)), torch layout [out, in].
    bound = 1.0 / jnp.sqrt(jnp.float32(F))
    W = jax.random.uniform(kw, (OUT, F), jnp.float32, -bound, bound)
    b = jax.random.uniform(kb, (OUT,), jnp.float32, -bound, bound)
    x = jax.random.normal(kx, (N, F), jnp.float32)

    y = linear_forward(x, W, b)
    y = jax.block_until_ready(y)

    # Reference check in plain JAX (same math as torch's x @ W.T + b).
    y_ref = x @ W.T + b
    assert y.shape == (N, OUT)
    assert jnp.allclose(y, y_ref, atol=1e-5, rtol=1e-5)

    print("KERNEL_OK")
</pallas_src>

<mosaic_0001>
module attributes {stable_mosaic.version = 11 : i64} {
  func.func @_linear_kernel(%arg0: i32, %arg1: memref<128x4xf32, #tpu.memory_space<vmem>>, %arg2: memref<4x1xf32, #tpu.memory_space<vmem>>, %arg3: memref<1xf32, #tpu.memory_space<smem>>, %arg4: memref<128x1xf32, #tpu.memory_space<vmem>>) attributes {dimension_semantics = [#tpu.dimension_semantics<parallel>], iteration_bounds = array<i64: 1>, scalar_prefetch = 0 : i64, scratch_operands = 0 : i64, tpu.core_type = #tpu.core_type<tc>, window_params = [{transform_indices = @transform_0, window_bounds = array<i64: 128, 4>}, {pipeline_mode = #tpu.pipeline_mode<synchronous>, transform_indices = @transform_1, window_bounds = array<i64: 4, 1>}, {transform_indices = @transform_2, window_bounds = array<i64: 1>}, {transform_indices = @transform_3, window_bounds = array<i64: 128, 1>}]} {
    %c0 = arith.constant 0 : index
    %c0_0 = arith.constant 0 : index
    %0 = vector.load %arg1[%c0, %c0_0] : memref<128x4xf32, #tpu.memory_space<vmem>>, vector<128x4xf32>
    %c0_1 = arith.constant 0 : index
    %c0_2 = arith.constant 0 : index
    %1 = vector.load %arg2[%c0_1, %c0_2] : memref<4x1xf32, #tpu.memory_space<vmem>>, vector<4x1xf32>
    %cst = arith.constant dense<0.000000e+00> : vector<128x1xf32>
    %2 = tpu.matmul %0, %1, %cst {dimension_numbers = #tpu.dot_dimension_numbers<[1], [0], [0], [1], [0, 0, 1, 1], [], []>} : vector<128x4xf32>, vector<4x1xf32>, vector<128x1xf32> -> vector<128x1xf32>
    %c0_3 = arith.constant 0 : index
    %3 = memref.load %arg3[%c0_3] : memref<1xf32, #tpu.memory_space<smem>>
    %4 = vector.broadcast %3 : f32 to vector<128x1xf32>
    %5 = arith.addf %2, %4 : vector<128x1xf32>
    %c0_4 = arith.constant 0 : index
    %c0_5 = arith.constant 0 : index
    %6 = vector.load %arg4[%c0_4, %c0_5] : memref<128x1xf32, #tpu.memory_space<vmem>>, vector<128x1xf32>
    tpu.vector_store %arg4[%c0_4, %c0_5], %5 {strides = array<i32>} : memref<128x1xf32, #tpu.memory_space<vmem>>, vector<128x1xf32>,
    return
  }
  func.func @transform_0(%arg0: i32) -> (i32, i32) {
    %c0_i32 = arith.constant 0 : i32
    %c0_i32_0 = arith.constant 0 : i32
    return %arg0, %c0_i32 : i32, i32
  }
  func.func @transform_1(%arg0: i32) -> (i32, i32) {
    %c0_i32 = arith.constant 0 : i32
    %c0_i32_0 = arith.constant 0 : i32
    %c0_i32_1 = arith.constant 0 : i32
    return %c0_i32, %c0_i32_0 : i32, i32
  }
  func.func @transform_2(%arg0: i32) -> i32 {
    %c0_i32 = arith.constant 0 : i32
    %c0_i32_0 = arith.constant 0 : i32
    return %c0_i32 : i32
  }
  func.func @transform_3(%arg0: i32) -> (i32, i32) {
    %c0_i32 = arith.constant 0 : i32
    %c0_i32_0 = arith.constant 0 : i32
    return %arg0, %c0_i32 : i32, i32
  }
}

</mosaic_0001>

<llo_original>
// kernel: tpu_custom_call.1
$region0: #{tpu_custom_call.1}
  #allocation0 [shape = 'u32[]', space=smem, size = 0x4, offset = 0x4, fixed_abs, tag = 'smem constant byte address 0x4 - core index']
  #allocation1 [shape = 'u32[144,128]{1,0:T(1,128)}', space=vmem, size = 0x12000, scoped, tag = 'internal scratch']
  #allocation2 [shape = 'f32[1]{0:T(128)S(6)}', space=smem, size = 0x200, scoped, tag = 'scoped memory for tpu_custom_call.1']
  %s0 = inlined_call_operand.vmem [shape: f32[128,4], index: 0, kind: input, shape index: {}]
  %s1 = inlined_call_operand.vmem [shape: f32[4,1], index: 1, kind: input, shape index: {}]
  %s2 = inlined_call_operand.<no memory space> [shape: f32[1], index: 2, kind: input, shape index: {}]
  %s3 = inlined_call_operand.vmem [shape: f32[128,1], index: 3, kind: output, shape index: {}]
  %s4 = sld [smem:[#allocation0]]
  $region22: #{tpu_custom_call.1} parent=0
    _
  %s6 = ssub.s32 1, %s4
  %s7 = scalar_select 0, %s6, %s4
  %8 = sst [smem:[#allocation2]] %s2
  // Predicated region
  $region2: #{tpu_custom_call.1} parent=0 // pred_check
    _
  $region3: #{tpu_custom_call.1} parent=0 // pred_check_branch
    %10 = sbr.rel (0) target = $region5
  $region4: #{tpu_custom_call.1} parent=0 // pred_region
    _
  $region5: #{tpu_custom_call.1} parent=0 // pred_fallthru
    _
  // Predicated region
  $region6: #{tpu_custom_call.1} parent=0 // pred_check
    _
  $region7: #{tpu_custom_call.1} parent=0 // pred_check_branch
    %12 = sbr.rel (0) target = $region9
  $region8: #{tpu_custom_call.1} parent=0 // pred_region
    _
  $region9: #{tpu_custom_call.1} parent=0 // pred_fallthru
    _
  // Predicated region
  $region10: #{tpu_custom_call.1} parent=0 // pred_check
    _
  $region11: #{tpu_custom_call.1} parent=0 // pred_check_branch
    %14 = sbr.rel (0) target = $region13
  $region12: #{tpu_custom_call.1} parent=0 // pred_region
    _
  $region13: #{tpu_custom_call.1} parent=0 // pred_fallthru
    _
  %v15 = vld [vmem:[%s0] sm:$0xff]
  %v16 = vld [vmem:[%s0 + $0x8] sm:$0xff]
  %v17 = vld [vmem:[%s0 + $0x10] sm:$0xff]
  %v18 = vld [vmem:[%s0 + $0x18] sm:$0xff]
  %v19 = vld [vmem:[%s0 + $0x20] sm:$0xff]
  %v20 = vld [vmem:[%s0 + $0x28] sm:$0xff]
  %v21 = vld [vmem:[%s0 + $0x30] sm:$0xff]
  %v22 = vld [vmem:[%s0 + $0x38] sm:$0xff]
  %v23 = vld [vmem:[%s0 + $0x40] sm:$0xff]
  %v24 = vld [vmem:[%s0 + $0x48] sm:$0xff]
  %v25 = vld [vmem:[%s0 + $0x50] sm:$0xff]
  %v26 = vld [vmem:[%s0 + $0x58] sm:$0xff]
  %v27 = vld [vmem:[%s0 + $0x60] sm:$0xff]
  %v28 = vld [vmem:[%s0 + $0x68] sm:$0xff]
  %v29 = vld [vmem:[%s0 + $0x70] sm:$0xff]
  %v30 = vld [vmem:[%s0 + $0x78] sm:$0xff]
  %v31 = vld [vmem:[%s1] sm:$0xf]
  %s32 = sld [smem:[#allocation2]]
  %v33 = vstv %s32
  %vm34 = vcmask 31744
  %v36 = vsel %vm34, %v15, 0
  %v39 = vsel %vm34, %v16, 0
  %v42 = vsel %vm34, %v17, 0
  %v45 = vsel %vm34, %v18, 0
  %v48 = vsel %vm34, %v19, 0
  %v51 = vsel %vm34, %v20, 0
  %v54 = vsel %vm34, %v21, 0
  %v57 = vsel %vm34, %v22, 0
  %v60 = vsel %vm34, %v23, 0
  %v63 = vsel %vm34, %v24, 0
  %v66 = vsel %vm34, %v25, 0
  %v69 = vsel %vm34, %v26, 0
  %v72 = vsel %vm34, %v27, 0
  %v75 = vsel %vm34, %v28, 0
  %v78 = vsel %vm34, %v29, 0
  %v81 = vsel %vm34, %v30, 0
  %vm83 = vcmask 1043456
  %v85 = vsel %vm83, %v31, 0
  %87 = vmatprep.subr.mxu0 0.0
  %88 = vmatpush1.msra.mxu0 %v85
  %89 = vmatprep.subr.mxu0 0.0
  %90 = vmatpush1.msra.mxu0 0.0
  %91 = vmatprep.subr.mxu0 0.0
  %92 = vmatpush1.msra.mxu0 0.0
  %93 = vmatprep.subr.mxu0 0.0
  %94 = vmatpush1.msra.mxu0 0.0
  %95 = vmatprep.subr.mxu0 0.0
  %96 = vmatpush1.msra.mxu0 0.0
  %97 = vmatprep.subr.mxu0 0.0
  %98 = vmatpush1.msra.mxu0 0.0
  %99 = vmatprep.subr.mxu0 0.0
  %100 = vmatpush1.msra.mxu0 0.0
  %101 = vmatprep.subr.mxu0 0.0
  %102 = vmatpush1.msra.mxu0 0.0
  %103 = vmatprep.subr.mxu0 0.0
  %104 = vmatpush1.msra.mxu0 0.0
  %105 = vmatprep.subr.mxu0 0.0
  %106 = vmatpush1.msra.mxu0 0.0
  %107 = vmatprep.subr.mxu0 0.0
  %108 = vmatpush1.msra.mxu0 0.0
  %109 = vmatprep.subr.mxu0 0.0
  %110 = vmatpush1.msra.mxu0 0.0
  %111 = vmatprep.subr.mxu0 0.0
  %112 = vmatpush1.msra.mxu0 0.0
  %113 = vmatprep.subr.mxu0 0.0
  %114 = vmatpush1.msra.mxu0 0.0
  %115 = vmatprep.subr.mxu0 0.0
  %116 = vmatpush1.msra.mxu0 0.0
  %117 = vmatprep.subr.mxu0 0.0
  %118 = vmatpush1.msra.mxu0 0.0
  %119 = vmatprep.subr.mxu0 0.0
  %120 = vmatpush1.msra.mxu0 0.0
  %121 = vmatprep.subr.mxu0 0.0
  %122 = vmatpush1.msra.mxu0 0.0
  %123 = vmatprep.subr.mxu0 0.0
  %124 = vmatpush1.msra.mxu0 0.0
  %125 = vmatprep.subr.mxu0 0.0
  %126 = vmatpush1.msra.mxu0 0.0
  %127 = vmatprep.subr.mxu0 0.0
  %128 = vmatpush1.msra.mxu0 0.0
  %129 = vmatprep.subr.mxu0 0.0
  %130 = vmatpush1.msra.mxu0 0.0
  %131 = vmatprep.subr.mxu0 0.0
  %132 = vmatpush1.msra.mxu0 0.0
  %133 = vmatprep.subr.mxu0 0.0
  %134 = vmatpush1.msra.mxu0 0.0
  %135 = vmatprep.subr.mxu0 0.0
  %136 = vmatpush1.msra.mxu0 0.0
  %137 = vmatprep.subr.mxu0 0.0
  %138 = vmatpush1.msra.mxu0 0.0
  %139 = vmatprep.subr.mxu0 0.0
  %140 = vmatpush1.msra.mxu0 0.0
  %141 = vmatprep.subr.mxu0 0.0
  %142 = vmatpush1.msra.mxu0 0.0
  %143 = vmatprep.subr.mxu0 0.0
  %144 = vmatpush1.msra.mxu0 0.0
  %145 = vmatprep.subr.mxu0 0.0
  %146 = vmatpush1.msra.mxu0 0.0
  %147 = vmatprep.subr.mxu0 0.0
  %148 = vmatpush1.msra.mxu0 0.0
  %149 = vmatprep.subr.mxu0 0.0
  %150 = vmatpush1.msra.mxu0 0.0
  %151 = vmatprep.mubr.f32.mxu0 0.0
  %152 = vmatmul.mubr.f32.gmra.mrb[0].mxu0 %v36
  %v153 = vpop.f32.mrb[0].mxu0
  %v154 = vadd.f32 %v33, %v153
  %v155 = vpop.f32.mrb[0].mxu0
  %156 = vmatprep.mubr.f32.mxu0 0.0
  %157 = vmatmul.mubr.f32.gmra.mrb[0].mxu0 %v39
  %v158 = vpop.f32.mrb[0].mxu0
  %v159 = vadd.f32 %v33, %v158
  %v160 = vpop.f32.mrb[0].mxu0
  %161 = vmatprep.mubr.f32.mxu0 0.0
  %162 = vmatmul.mubr.f32.gmra.mrb[0].mxu0 %v42
  %v163 = vpop.f32.mrb[0].mxu0
  %v164 = vadd.f32 %v33, %v163
  %v165 = vpop.f32.mrb[0].mxu0
  %166 = vmatprep.mubr.f32.mxu0 0.0
  %167 = vmatmul.mubr.f32.gmra.mrb[0].mxu0 %v45
  %v168 = vpop.f32.mrb[0].mxu0
  %v169 = vadd.f32 %v33, %v168
  %v170 = vpop.f32.mrb[0].mxu0
  %171 = vmatprep.mubr.f32.mxu0 0.0
  %172 = vmatmul.mubr.f32.gmra.mrb[0].mxu0 %v48
  %v173 = vpop.f32.mrb[0].mxu0
  %v174 = vadd.f32 %v33, %v173
  %v175 = vpop.f32.mrb[0].mxu0
  %176 = vmatprep.mubr.f32.mxu0 0.0
  %177 = vmatmul.mubr.f32.gmra.mrb[0].mxu0 %v51
  %v178 = vpop.f32.mrb[0].mxu0
  %v179 = vadd.f32 %v33, %v178
  %v180 = vpop.f32.mrb[0].mxu0
  %181 = vmatprep.mubr.f32.mxu0 0.0
  %182 = vmatmul.mubr.f32.gmra.mrb[0].mxu0 %v54
  %v183 = vpop.f32.mrb[0].mxu0
  %v184 = vadd.f32 %v33, %v183
  %v185 = vpop.f32.mrb[0].mxu0
  %186 = vmatprep.mubr.f32.mxu0 0.0
  %187 = vmatmul.mubr.f32.gmra.mrb[0].mxu0 %v57
  %v188 = vpop.f32.mrb[0].mxu0
  %v189 = vadd.f32 %v33, %v188
  %v190 = vpop.f32.mrb[0].mxu0
  %191 = vmatprep.mubr.f32.mxu0 0.0
  %192 = vmatmul.mubr.f32.gmra.mrb[0].mxu0 %v60
  %v193 = vpop.f32.mrb[0].mxu0
  %v194 = vadd.f32 %v33, %v193
  %v195 = vpop.f32.mrb[0].mxu0
  %196 = vmatprep.mubr.f32.mxu0 0.0
  %197 = vmatmul.mubr.f32.gmra.mrb[0].mxu0 %v63
  %v198 = vpop.f32.mrb[0].mxu0
  %v199 = vadd.f32 %v33, %v198
  %v200 = vpop.f32.mrb[0].mxu0
  %201 = vmatprep.mubr.f32.mxu0 0.0
  %202 = vmatmul.mubr.f32.gmra.mrb[0].mxu0 %v66
  %v203 = vpop.f32.mrb[0].mxu0
  %v204 = vadd.f32 %v33, %v203
  %v205 = vpop.f32.mrb[0].mxu0
  %206 = vmatprep.mubr.f32.mxu0 0.0
  %207 = vmatmul.mubr.f32.gmra.mrb[0].mxu0 %v69
  %v208 = vpop.f32.mrb[0].mxu0
  %v209 = vadd.f32 %v33, %v208
  %v210 = vpop.f32.mrb[0].mxu0
  %211 = vmatprep.mubr.f32.mxu0 0.0
  %212 = vmatmul.mubr.f32.gmra.mrb[0].mxu0 %v72
  %v213 = vpop.f32.mrb[0].mxu0
  %v214 = vadd.f32 %v33, %v213
  %v215 = vpop.f32.mrb[0].mxu0
  %216 = vmatprep.mubr.f32.mxu0 0.0
  %217 = vmatmul.mubr.f32.gmra.mrb[0].mxu0 %v75
  %v218 = vpop.f32.mrb[0].mxu0
  %v219 = vadd.f32 %v33, %v218
  %v220 = vpop.f32.mrb[0].mxu0
  %221 = vmatprep.mubr.f32.mxu0 0.0
  %222 = vmatmul.mubr.f32.gmra.mrb[0].mxu0 %v78
  %v223 = vpop.f32.mrb[0].mxu0
  %v224 = vadd.f32 %v33, %v223
  %v225 = vpop.f32.mrb[0].mxu0
  %226 = vmatprep.mubr.f32.mxu0 0.0
  %227 = vmatmul.mubr.f32.gmra.mrb[0].mxu0 %v81
  %v228 = vpop.f32.mrb[0].mxu0
  %v229 = vadd.f32 %v33, %v228
  %v230 = vpop.f32.mrb[0].mxu0
  %231 = vdwg.mxu0
  %vm232 = vcmask 7168
  %233 = vst.msk [vmem:[%s3] sm:$0xff] %vm232, %v154
  %234 = vst.msk [vmem:[%s3 + $0x8] sm:$0xff] %vm232, %v159
  %235 = vst.msk [vmem:[%s3 + $0x10] sm:$0xff] %vm232, %v164
  %236 = vst.msk [vmem:[%s3 + $0x18] sm:$0xff] %vm232, %v169
  %237 = vst.msk [vmem:[%s3 + $0x20] sm:$0xff] %vm232, %v174
  %238 = vst.msk [vmem:[%s3 + $0x28] sm:$0xff] %vm232, %v179
  %239 = vst.msk [vmem:[%s3 + $0x30] sm:$0xff] %vm232, %v184
  %240 = vst.msk [vmem:[%s3 + $0x38] sm:$0xff] %vm232, %v189
  %241 = vst.msk [vmem:[%s3 + $0x40] sm:$0xff] %vm232, %v194
  %242 = vst.msk [vmem:[%s3 + $0x48] sm:$0xff] %vm232, %v199
  %243 = vst.msk [vmem:[%s3 + $0x50] sm:$0xff] %vm232, %v204
  %244 = vst.msk [vmem:[%s3 + $0x58] sm:$0xff] %vm232, %v209
  %245 = vst.msk [vmem:[%s3 + $0x60] sm:$0xff] %vm232, %v214
  %246 = vst.msk [vmem:[%s3 + $0x68] sm:$0xff] %vm232, %v219
  %247 = vst.msk [vmem:[%s3 + $0x70] sm:$0xff] %vm232, %v224
  %248 = vst.msk [vmem:[%s3 + $0x78] sm:$0xff] %vm232, %v229
  // Predicated region
  $region14: #{tpu_custom_call.1} parent=0 // pred_check
    _
  $region15: #{tpu_custom_call.1} parent=0 // pred_check_branch
    %250 = sbr.rel (0) target = $region17
  $region16: #{tpu_custom_call.1} parent=0 // pred_region
    _
  $region17: #{tpu_custom_call.1} parent=0 // pred_fallthru
    _
  // Predicated region
  $region18: #{tpu_custom_call.1} parent=0 // pred_check
    _
  $region19: #{tpu_custom_call.1} parent=0 // pred_check_branch
    %252 = sbr.rel (0) target = $region21
  $region20: #{tpu_custom_call.1} parent=0 // pred_region
    _
  $region21: #{tpu_custom_call.1} parent=0 // pred_fallthru
    _

</llo_original>
